<compile_context>
chip_gen: v7x
topology: tpu7x:2x2x1
jax: 0.10.0
libtpu: 0.0.40
codegen_flags: <defaults>
</compile_context>

<pallas_src>
import functools

import jax
import jax.numpy as jnp
from jax.experimental import pallas as pl
from jax.experimental.pallas import tpu as pltpu

_NEG = -1e30  # finite "-inf" for the pre-pool time-validity mask


def make_cnn_kernel(E, kmax, lout, nF):
    kE = kmax * E

    def kernel(emb_ref, wf_ref, bf_ref, mask_ref, wc_ref, bc_ref, out_ref):
        emb = emb_ref[...]                                    # (TB, Lp*E) bf16, lane-dense
        TB = emb.shape[0]

        # Fused im2col, (lout, TB)-major M axis: output time step t is the contiguous
        # lane window [t*E, t*E + kmax*E); stack the lout windows along sublanes.
        x2d = jnp.concatenate(
            [emb[:, t * E: t * E + kE] for t in range(lout)], axis=0)   # (lout*TB, kE)

        # One MXU matmul for every branch (branch-specific taps are zero weight rows).
        y = jnp.dot(x2d, wf_ref[...],
                    preferred_element_type=jnp.float32)                 # (lout*TB, nF) f32

        # Masked max-pool over time: unrolled full-vreg VPU maxes over aligned row blocks.
        pooled = y[0:TB] + mask_ref[0]                                   # (TB, nF)
        for t in range(1, lout):
            pooled = jnp.maximum(pooled, y[t * TB:(t + 1) * TB] + mask_ref[t])

        # Conv bias after the pool (bias constant over time: max(x+b) == max(x)+b), ReLU.
        feats = jnp.maximum(pooled + bf_ref[...], 0.0)                   # (TB, nF) f32
        # TODO(synk): nn.Dropout is stochastic in train mode; eval-mode (identity) here.

        logits = jnp.dot(feats.astype(wc_ref.dtype), wc_ref[...],
                         preferred_element_type=jnp.float32) + bc_ref[...]
        out_ref[...] = logits                                            # (TB, C_pad) lane-dense

    return kernel


def _vmem_capacity_bytes():
    """Per-TensorCore VMEM capacity; falls back to 64 MiB (v7x, the smallest)."""
    try:
        cap = int(getattr(pltpu.get_tpu_info(), "vmem_capacity_bytes", 0) or 0)
        if cap > 0:
            return cap
    except Exception:
        pass
    return 64 * 1024 * 1024


def _pick_tb(B, per_row_bytes, const_bytes, vmem_cap):
    """Batch tile: as big as the VMEM budget allows (amortizes ~0.35us grid-step
    overhead), capped at 1024, >=2 grid steps when the batch allows (v7x megacore)."""
    budget = max(int(vmem_cap * 0.75) - const_bytes, 8 * per_row_bytes)
    tb = budget // per_row_bytes
    tb = min(tb, 1024)
    b_pad8 = ((B + 7) // 8) * 8
    tb = min(tb, b_pad8)
    if b_pad8 >= 16:
        tb = min(tb, max(8, (b_pad8 // 2) // 8 * 8))
    return max(8, (tb // 8) * 8)


def cnn_classifier_forward(token_ids, embed_table, conv_weights, conv_biases,
                           cls_weight, cls_bias, kernel_sizes):
    """token_ids: (B, L) int32; embed_table: (V, E).
    conv_weights[i]: (F, E, k_i) (PyTorch Conv1d layout); conv_biases[i]: (F,)
    cls_weight: (C, len(kernel_sizes)*F); cls_bias: (C,)."""
    B, L = token_ids.shape
    E = embed_table.shape[1]
    F = conv_weights[0].shape[0]
    C = cls_weight.shape[0]
    n = len(kernel_sizes)
    kmin, kmax = min(kernel_sizes), max(kernel_sizes)
    assert L >= kmax, f"sequence length {L} must be >= max kernel size {kmax}"

    nF = n * F
    C_pad = pl.cdiv(C, 128) * 128
    lout = L - kmin + 1                   # fused output length (= largest branch lout)
    Lp = L + (kmax - kmin)                # zero time-pad so every kmax-tap window is in-bounds
    kE = kmax * E
    lanes = Lp * E

    # Embedding lookup stays plain-JAX glue (tiny vocab here); one fused gather+pad+reshape
    # produces the lane-dense (B, Lp*E) bf16 layout the kernel wants.
    # TODO(synk): for large vocabularies fuse the gather in-kernel (scalar-prefetch ids +
    # manual DMA row gather from pl.ANY) to avoid the HBM round trip of the activation.
    embeds = jnp.take(embed_table, token_ids, axis=0)             # (B, L, E) f32
    embeds = jnp.pad(embeds, ((0, 0), (0, Lp - L), (0, 0)))
    embeds = embeds.reshape(B, lanes).astype(jnp.bfloat16)        # (B, Lp*E) bf16

    # VMEM budget per batch row: double-buffered emb + out blocks plus in-body temporaries
    # (im2col bf16, matmul result f32, pooled/features/logits f32).
    per_row = (2 * lanes * 2 + 2 * C_pad * 4
               + lout * kE * 2 + lout * nF * 4
               + 4 * nF * 4 + C_pad * 4)
    const_bytes = 2 * (kE * nF * 2 + nF * 4 + lout * nF * 4 + nF * C_pad * 2 + C_pad * 4)
    vmem_cap = _vmem_capacity_bytes()
    TB = _pick_tb(B, per_row, const_bytes, vmem_cap)

    B_pad = pl.cdiv(B, TB) * TB
    if B_pad != B:
        embeds = jnp.pad(embeds, ((0, B_pad - B), (0, 0)))        # at most TB-1 padded rows

    # Fused im2col conv weight: (F, E, k) -> rows j*E+e = w[f, e, j], zero rows for taps
    # j >= k, branches concatenated along the output-feature (lane) axis.
    w_cols = []
    for w, k in zip(conv_weights, kernel_sizes):
        wk = jnp.transpose(w, (2, 1, 0)).reshape(k * E, F)
        wk = jnp.pad(wk, ((0, (kmax - k) * E), (0, 0)))
        w_cols.append(wk)
    w_fused = jnp.concatenate(w_cols, axis=1).astype(jnp.bfloat16)        # (kmax*E, n*F)
    b_fused = jnp.concatenate([b.reshape(1, F) for b in conv_biases],
                              axis=1).astype(jnp.float32)                 # (1, n*F)

    # Per-branch time-validity mask (0 valid / -1e30 invalid), added before the pool.
    t_idx = jnp.arange(lout, dtype=jnp.int32)[:, None]
    mask_cols = []
    for k in kernel_sizes:
        col = jnp.where(t_idx <= (L - k), 0.0, _NEG).astype(jnp.float32)
        mask_cols.append(jnp.broadcast_to(col, (lout, F)))
    mask = jnp.concatenate(mask_cols, axis=1).reshape(lout, 1, nF)        # (lout, 1, n*F)

    # Classifier: pre-transposed, columns zero-padded to C_pad -> lane-dense output store.
    wc_p = jnp.zeros((nF, C_pad), jnp.bfloat16).at[:, :C].set(
        cls_weight.T.astype(jnp.bfloat16))
    bc_p = jnp.zeros((1, C_pad), jnp.float32).at[:, :C].set(
        cls_bias.reshape(1, C).astype(jnp.float32))

    # Scoped VMEM limit derived from the chosen tile (with headroom), below physical cap.
    need = per_row * TB + const_bytes + (2 << 20)
    vmem_limit = int(min(0.9 * vmem_cap, max(2 * need, 32 * 1024 * 1024)))

    kernel = make_cnn_kernel(E, kmax, lout, nF)

    in_specs = [
        pl.BlockSpec((TB, lanes), lambda i: (i, 0)),         # streamed per batch tile
        pl.BlockSpec((kE, nF), lambda i: (0, 0)),            # fused conv weight (resident)
        pl.BlockSpec((1, nF), lambda i: (0, 0)),             # fused conv bias
        pl.BlockSpec((lout, 1, nF), lambda i: (0, 0, 0)),    # time-validity mask
        pl.BlockSpec((nF, C_pad), lambda i: (0, 0)),         # classifier weight
        pl.BlockSpec((1, C_pad), lambda i: (0, 0)),          # classifier bias
    ]

    out = pl.pallas_call(
        kernel,
        out_shape=jax.ShapeDtypeStruct((B_pad, C_pad), jnp.float32),
        grid_spec=pltpu.PrefetchScalarGridSpec(
            num_scalar_prefetch=0,
            grid=(B_pad // TB,),
            in_specs=in_specs,
            out_specs=pl.BlockSpec((TB, C_pad), lambda i: (i, 0)),
        ),
        compiler_params=pltpu.CompilerParams(
            dimension_semantics=("parallel",),    # batch tiles shardable across TCs (v7x)
            vmem_limit_bytes=vmem_limit,
        ),
    )(embeds, w_fused, b_fused, mask, wc_p, bc_p)

    return out[:B, :C]


def reference_forward(token_ids, embed_table, conv_weights, conv_biases,
                      cls_weight, cls_bias, kernel_sizes):
    """Pure-JAX f32 reference mirroring the PyTorch forward (eval mode)."""
    embeds = jnp.take(embed_table, token_ids, axis=0)           # (B, L, E)
    x = jnp.transpose(embeds, (0, 2, 1))                        # (B, E, L)  NCW
    feats = []
    for w, b in zip(conv_weights, conv_biases):
        y = jax.lax.conv_general_dilated(
            x, w, window_strides=(1,), padding="VALID",
            dimension_numbers=("NCH", "OIH", "NCH"))            # (B, F, Lout)
        y = y + b[None, :, None]
        feats.append(jnp.max(y, axis=2))                        # (B, F)
    features = jnp.concatenate(feats, axis=1)
    features = jnp.maximum(features, 0.0)
    return features @ cls_weight.T + cls_bias[None, :]


if __name__ == "__main__":
    # Small shapes consistent with the module: batch=2, seq len=8, embed=32,
    # feature maps=128, kernel sizes (2,3,4,5), 2 classes.
    B, L, V, E, F, C = 2, 8, 50, 32, 128, 2
    kernel_sizes = (2, 3, 4, 5)

    key = jax.random.PRNGKey(0)
    keys = jax.random.split(key, 3 + 2 * len(kernel_sizes))

    token_ids = jax.random.randint(keys[0], (B, L), 0, V, dtype=jnp.int32)
    embed_table = jax.random.normal(keys[1], (V, E), dtype=jnp.float32) * 0.1

    conv_weights, conv_biases = [], []
    for i, k in enumerate(kernel_sizes):
        conv_weights.append(
            jax.random.normal(keys[2 + 2 * i], (F, E, k), dtype=jnp.float32) * 0.1)
        conv_biases.append(
            jax.random.normal(keys[3 + 2 * i], (F,), dtype=jnp.float32) * 0.1)

    cls_weight = jax.random.normal(keys[-1], (C, F * len(kernel_sizes)),
                                   dtype=jnp.float32) * 0.1
    cls_bias = jnp.zeros((C,), dtype=jnp.float32)

    fwd = jax.jit(functools.partial(cnn_classifier_forward,
                                    kernel_sizes=kernel_sizes))
    logits = fwd(token_ids, embed_table, conv_weights, conv_biases,
                 cls_weight, cls_bias)
    logits = jax.block_until_ready(logits)

    ref = reference_forward(token_ids, embed_table, conv_weights, conv_biases,
                            cls_weight, cls_bias, kernel_sizes)
    assert logits.shape == (B, C)
    # bf16 matmul operands (f32 accumulation) -> slightly looser tolerance vs f32 reference.
    assert jnp.allclose(logits, ref, atol=1e-2, rtol=1e-2), (logits, ref)

    print("KERNEL_OK")
</pallas_src>

<mosaic_0001>
module attributes {stable_mosaic.version = 11 : i64} {
  func.func @kernel(%arg0: i32, %arg1: memref<8x352xbf16, #tpu.memory_space<vmem>>, %arg2: memref<160x512xbf16, #tpu.memory_space<vmem>>, %arg3: memref<1x512xf32, #tpu.memory_space<vmem>>, %arg4: memref<7x1x512xf32, #tpu.memory_space<vmem>>, %arg5: memref<512x128xbf16, #tpu.memory_space<vmem>>, %arg6: memref<1x128xf32, #tpu.memory_space<vmem>>, %arg7: memref<8x128xf32, #tpu.memory_space<vmem>>) attributes {dimension_semantics = [#tpu.dimension_semantics<parallel>], iteration_bounds = array<i64: 1>, scalar_prefetch = 0 : i64, scratch_operands = 0 : i64, tpu.core_type = #tpu.core_type<tc>, window_params = [{transform_indices = @transform_0, window_bounds = array<i64: 8, 352>}, {pipeline_mode = #tpu.pipeline_mode<synchronous>, transform_indices = @transform_1, window_bounds = array<i64: 160, 512>}, {pipeline_mode = #tpu.pipeline_mode<synchronous>, transform_indices = @transform_2, window_bounds = array<i64: 1, 512>}, {pipeline_mode = #tpu.pipeline_mode<synchronous>, transform_indices = @transform_3, window_bounds = array<i64: 7, 1, 512>}, {pipeline_mode = #tpu.pipeline_mode<synchronous>, transform_indices = @transform_4, window_bounds = array<i64: 512, 128>}, {pipeline_mode = #tpu.pipeline_mode<synchronous>, transform_indices = @transform_5, window_bounds = array<i64: 1, 128>}, {transform_indices = @transform_6, window_bounds = array<i64: 8, 128>}]} {
    %c0 = arith.constant 0 : index
    %c0_0 = arith.constant 0 : index
    %0 = vector.load %arg1[%c0, %c0_0] : memref<8x352xbf16, #tpu.memory_space<vmem>>, vector<8x352xbf16>
    %1 = vector.extract_strided_slice %0 {offsets = [0, 0], sizes = [8, 160], strides = [1, 1]} : vector<8x352xbf16> to vector<8x160xbf16>
    %2 = vector.extract_strided_slice %0 {offsets = [0, 32], sizes = [8, 160], strides = [1, 1]} : vector<8x352xbf16> to vector<8x160xbf16>
    %3 = vector.extract_strided_slice %0 {offsets = [0, 64], sizes = [8, 160], strides = [1, 1]} : vector<8x352xbf16> to vector<8x160xbf16>
    %4 = vector.extract_strided_slice %0 {offsets = [0, 96], sizes = [8, 160], strides = [1, 1]} : vector<8x352xbf16> to vector<8x160xbf16>
    %5 = vector.extract_strided_slice %0 {offsets = [0, 128], sizes = [8, 160], strides = [1, 1]} : vector<8x352xbf16> to vector<8x160xbf16>
    %6 = vector.extract_strided_slice %0 {offsets = [0, 160], sizes = [8, 160], strides = [1, 1]} : vector<8x352xbf16> to vector<8x160xbf16>
    %7 = vector.extract_strided_slice %0 {offsets = [0, 192], sizes = [8, 160], strides = [1, 1]} : vector<8x352xbf16> to vector<8x160xbf16>
    %8 = tpu.concatenate %1, %2, %3, %4, %5, %6, %7 in 0 : vector<8x160xbf16>, vector<8x160xbf16>, vector<8x160xbf16>, vector<8x160xbf16>, vector<8x160xbf16>, vector<8x160xbf16>, vector<8x160xbf16> -> vector<56x160xbf16>
    %c0_1 = arith.constant 0 : index
    %c0_2 = arith.constant 0 : index
    %9 = vector.load %arg2[%c0_1, %c0_2] : memref<160x512xbf16, #tpu.memory_space<vmem>>, vector<160x512xbf16>
    %cst = arith.constant dense<0.000000e+00> : vector<56x512xf32>
    %10 = tpu.matmul %8, %9, %cst {dimension_numbers = #tpu.dot_dimension_numbers<[1], [0], [0], [1], [0, 0, 1, 1], [], []>} : vector<56x160xbf16>, vector<160x512xbf16>, vector<56x512xf32> -> vector<56x512xf32>
    %11 = vector.extract_strided_slice %10 {offsets = [0, 0], sizes = [8, 512], strides = [1, 1]} : vector<56x512xf32> to vector<8x512xf32>
    %c0_3 = arith.constant 0 : index
    %c0_4 = arith.constant 0 : index
    %c0_5 = arith.constant 0 : index
    %12 = vector.load %arg4[%c0_3, %c0_4, %c0_5] : memref<7x1x512xf32, #tpu.memory_space<vmem>>, vector<1x1x512xf32>
    %13 = vector.shape_cast %12 : vector<1x1x512xf32> to vector<1x512xf32>
    %14 = vector.broadcast %13 : vector<1x512xf32> to vector<8x512xf32>
    %15 = arith.addf %11, %14 : vector<8x512xf32>
    %16 = vector.extract_strided_slice %10 {offsets = [8, 0], sizes = [8, 512], strides = [1, 1]} : vector<56x512xf32> to vector<8x512xf32>
    %c1 = arith.constant 1 : index
    %c0_6 = arith.constant 0 : index
    %c0_7 = arith.constant 0 : index
    %17 = vector.load %arg4[%c1, %c0_6, %c0_7] : memref<7x1x512xf32, #tpu.memory_space<vmem>>, vector<1x1x512xf32>
    %18 = vector.shape_cast %17 : vector<1x1x512xf32> to vector<1x512xf32>
    %19 = vector.broadcast %18 : vector<1x512xf32> to vector<8x512xf32>
    %20 = arith.addf %16, %19 : vector<8x512xf32>
    %21 = arith.maximumf %15, %20 : vector<8x512xf32>
    %22 = vector.extract_strided_slice %10 {offsets = [16, 0], sizes = [8, 512], strides = [1, 1]} : vector<56x512xf32> to vector<8x512xf32>
    %c2 = arith.constant 2 : index
    %c0_8 = arith.constant 0 : index
    %c0_9 = arith.constant 0 : index
    %23 = vector.load %arg4[%c2, %c0_8, %c0_9] : memref<7x1x512xf32, #tpu.memory_space<vmem>>, vector<1x1x512xf32>
    %24 = vector.shape_cast %23 : vector<1x1x512xf32> to vector<1x512xf32>
    %25 = vector.broadcast %24 : vector<1x512xf32> to vector<8x512xf32>
    %26 = arith.addf %22, %25 : vector<8x512xf32>
    %27 = arith.maximumf %21, %26 : vector<8x512xf32>
    %28 = vector.extract_strided_slice %10 {offsets = [24, 0], sizes = [8, 512], strides = [1, 1]} : vector<56x512xf32> to vector<8x512xf32>
    %c3 = arith.constant 3 : index
    %c0_10 = arith.constant 0 : index
    %c0_11 = arith.constant 0 : index
    %29 = vector.load %arg4[%c3, %c0_10, %c0_11] : memref<7x1x512xf32, #tpu.memory_space<vmem>>, vector<1x1x512xf32>
    %30 = vector.shape_cast %29 : vector<1x1x512xf32> to vector<1x512xf32>
    %31 = vector.broadcast %30 : vector<1x512xf32> to vector<8x512xf32>
    %32 = arith.addf %28, %31 : vector<8x512xf32>
    %33 = arith.maximumf %27, %32 : vector<8x512xf32>
    %34 = vector.extract_strided_slice %10 {offsets = [32, 0], sizes = [8, 512], strides = [1, 1]} : vector<56x512xf32> to vector<8x512xf32>
    %c4 = arith.constant 4 : index
    %c0_12 = arith.constant 0 : index
    %c0_13 = arith.constant 0 : index
    %35 = vector.load %arg4[%c4, %c0_12, %c0_13] : memref<7x1x512xf32, #tpu.memory_space<vmem>>, vector<1x1x512xf32>
    %36 = vector.shape_cast %35 : vector<1x1x512xf32> to vector<1x512xf32>
    %37 = vector.broadcast %36 : vector<1x512xf32> to vector<8x512xf32>
    %38 = arith.addf %34, %37 : vector<8x512xf32>
    %39 = arith.maximumf %33, %38 : vector<8x512xf32>
    %40 = vector.extract_strided_slice %10 {offsets = [40, 0], sizes = [8, 512], strides = [1, 1]} : vector<56x512xf32> to vector<8x512xf32>
    %c5 = arith.constant 5 : index
    %c0_14 = arith.constant 0 : index
    %c0_15 = arith.constant 0 : index
    %41 = vector.load %arg4[%c5, %c0_14, %c0_15] : memref<7x1x512xf32, #tpu.memory_space<vmem>>, vector<1x1x512xf32>
    %42 = vector.shape_cast %41 : vector<1x1x512xf32> to vector<1x512xf32>
    %43 = vector.broadcast %42 : vector<1x512xf32> to vector<8x512xf32>
    %44 = arith.addf %40, %43 : vector<8x512xf32>
    %45 = arith.maximumf %39, %44 : vector<8x512xf32>
    %46 = vector.extract_strided_slice %10 {offsets = [48, 0], sizes = [8, 512], strides = [1, 1]} : vector<56x512xf32> to vector<8x512xf32>
    %c6 = arith.constant 6 : index
    %c0_16 = arith.constant 0 : index
    %c0_17 = arith.constant 0 : index
    %47 = vector.load %arg4[%c6, %c0_16, %c0_17] : memref<7x1x512xf32, #tpu.memory_space<vmem>>, vector<1x1x512xf32>
    %48 = vector.shape_cast %47 : vector<1x1x512xf32> to vector<1x512xf32>
    %49 = vector.broadcast %48 : vector<1x512xf32> to vector<8x512xf32>
    %50 = arith.addf %46, %49 : vector<8x512xf32>
    %51 = arith.maximumf %45, %50 : vector<8x512xf32>
    %c0_18 = arith.constant 0 : index
    %c0_19 = arith.constant 0 : index
    %52 = vector.load %arg3[%c0_18, %c0_19] : memref<1x512xf32, #tpu.memory_space<vmem>>, vector<1x512xf32>
    %53 = vector.broadcast %52 : vector<1x512xf32> to vector<8x512xf32>
    %54 = arith.addf %51, %53 : vector<8x512xf32>
    %cst_20 = arith.constant 0.000000e+00 : f32
    %55 = vector.broadcast %cst_20 : f32 to vector<8x512xf32>
    %56 = arith.maximumf %54, %55 : vector<8x512xf32>
    %57 = arith.truncf %56 : vector<8x512xf32> to vector<8x512xbf16>
    %c0_21 = arith.constant 0 : index
    %c0_22 = arith.constant 0 : index
    %58 = vector.load %arg5[%c0_21, %c0_22] : memref<512x128xbf16, #tpu.memory_space<vmem>>, vector<512x128xbf16>
    %cst_23 = arith.constant dense<0.000000e+00> : vector<8x128xf32>
    %59 = tpu.matmul %57, %58, %cst_23 {dimension_numbers = #tpu.dot_dimension_numbers<[1], [0], [0], [1], [0, 0, 1, 1], [], []>} : vector<8x512xbf16>, vector<512x128xbf16>, vector<8x128xf32> -> vector<8x128xf32>
    %c0_24 = arith.constant 0 : index
    %c0_25 = arith.constant 0 : index
    %60 = vector.load %arg6[%c0_24, %c0_25] : memref<1x128xf32, #tpu.memory_space<vmem>>, vector<1x128xf32>
    %61 = vector.broadcast %60 : vector<1x128xf32> to vector<8x128xf32>
    %62 = arith.addf %59, %61 : vector<8x128xf32>
    %c0_26 = arith.constant 0 : index
    %c0_27 = arith.constant 0 : index
    %63 = vector.load %arg7[%c0_26, %c0_27] : memref<8x128xf32, #tpu.memory_space<vmem>>, vector<8x128xf32>
    tpu.vector_store %arg7[%c0_26, %c0_27], %62 {strides = array<i32>} : memref<8x128xf32, #tpu.memory_space<vmem>>, vector<8x128xf32>,
    return
  }
  func.func @transform_0(%arg0: i32) -> (i32, i32) {
    %c0_i32 = arith.constant 0 : i32
    %c0_i32_0 = arith.constant 0 : i32
    return %arg0, %c0_i32 : i32, i32
  }
  func.func @transform_1(%arg0: i32) -> (i32, i32) {
    %c0_i32 = arith.constant 0 : i32
    %c0_i32_0 = arith.constant 0 : i32
    %c0_i32_1 = arith.constant 0 : i32
    return %c0_i32, %c0_i32_0 : i32, i32
  }
  func.func @transform_2(%arg0: i32) -> (i32, i32) {
    %c0_i32 = arith.constant 0 : i32
    %c0_i32_0 = arith.constant 0 : i32
    %c0_i32_1 = arith.constant 0 : i32
    return %c0_i32, %c0_i32_0 : i32, i32
  }
  func.func @transform_3(%arg0: i32) -> (i32, i32, i32) {
    %c0_i32 = arith.constant 0 : i32
    %c0_i32_0 = arith.constant 0 : i32
    %c0_i32_1 = arith.constant 0 : i32
    %c0_i32_2 = arith.constant 0 : i32
    return %c0_i32, %c0_i32_0, %c0_i32_1 : i32, i32, i32
  }
  func.func @transform_4(%arg0: i32) -> (i32, i32) {
    %c0_i32 = arith.constant 0 : i32
    %c0_i32_0 = arith.constant 0 : i32
    %c0_i32_1 = arith.constant 0 : i32
    return %c0_i32, %c0_i32_0 : i32, i32
  }
  func.func @transform_5(%arg0: i32) -> (i32, i32) {
    %c0_i32 = arith.constant 0 : i32
    %c0_i32_0 = arith.constant 0 : i32
    %c0_i32_1 = arith.constant 0 : i32
    return %c0_i32, %c0_i32_0 : i32, i32
  }
  func.func @transform_6(%arg0: i32) -> (i32, i32) {
    %c0_i32 = arith.constant 0 : i32
    %c0_i32_0 = arith.constant 0 : i32
    return %arg0, %c0_i32 : i32, i32
  }
}

</mosaic_0001>

<llo_original>
// kernel: cnn_classifier_forward.1
$region0: #{cnn_classifier_forward.1}
  #allocation0 [shape = 'u32[]', space=smem, size = 0x4, offset = 0x4, fixed_abs, tag = 'smem constant byte address 0x4 - core index']
  #allocation1 [shape = 'u32[144,128]{1,0:T(1,128)}', space=vmem, size = 0x12000, scoped, tag = 'internal scratch']
  %s0 = inlined_call_operand.vmem [shape: bf16[8,352], index: 0, kind: input, shape index: {}]
  %s1 = inlined_call_operand.vmem [shape: bf16[160,512], index: 1, kind: input, shape index: {}]
  %s2 = inlined_call_operand.vmem [shape: f32[1,512], index: 2, kind: input, shape index: {}]
  %s3 = inlined_call_operand.vmem [shape: f32[7,1,512], index: 3, kind: input, shape index: {}]
  %s4 = inlined_call_operand.vmem [shape: bf16[512,128], index: 4, kind: input, shape index: {}]
  %s5 = inlined_call_operand.vmem [shape: f32[1,128], index: 5, kind: input, shape index: {}]
  %s6 = inlined_call_operand.vmem [shape: f32[8,128], index: 6, kind: output, shape index: {}]
  %s7 = sld [smem:[#allocation0]]
  $region34: #{cnn_classifier_forward.1} parent=0
    _
  %s9 = ssub.s32 1, %s7
  %s10 = scalar_select 0, %s9, %s7
  // Predicated region
  $region2: #{cnn_classifier_forward.1} parent=0 // pred_check
    _
  $region3: #{cnn_classifier_forward.1} parent=0 // pred_check_branch
    %12 = sbr.rel (0) target = $region5
  $region4: #{cnn_classifier_forward.1} parent=0 // pred_region
    _
  $region5: #{cnn_classifier_forward.1} parent=0 // pred_fallthru
    _
  // Predicated region
  $region6: #{cnn_classifier_forward.1} parent=0 // pred_check
    _
  $region7: #{cnn_classifier_forward.1} parent=0 // pred_check_branch
    %14 = sbr.rel (0) target = $region9
  $region8: #{cnn_classifier_forward.1} parent=0 // pred_region
    _
  $region9: #{cnn_classifier_forward.1} parent=0 // pred_fallthru
    _
  // Predicated region
  $region10: #{cnn_classifier_forward.1} parent=0 // pred_check
    _
  $region11: #{cnn_classifier_forward.1} parent=0 // pred_check_branch
    %16 = sbr.rel (0) target = $region13
  $region12: #{cnn_classifier_forward.1} parent=0 // pred_region
    _
  $region13: #{cnn_classifier_forward.1} parent=0 // pred_fallthru
    _
  // Predicated region
  $region14: #{cnn_classifier_forward.1} parent=0 // pred_check
    _
  $region15: #{cnn_classifier_forward.1} parent=0 // pred_check_branch
    %18 = sbr.rel (0) target = $region17
  $region16: #{cnn_classifier_forward.1} parent=0 // pred_region
    _
  $region17: #{cnn_classifier_forward.1} parent=0 // pred_fallthru
    _
  // Predicated region
  $region18: #{cnn_classifier_forward.1} parent=0 // pred_check
    _
  $region19: #{cnn_classifier_forward.1} parent=0 // pred_check_branch
    %20 = sbr.rel (0) target = $region21
  $region20: #{cnn_classifier_forward.1} parent=0 // pred_region
    _
  $region21: #{cnn_classifier_forward.1} parent=0 // pred_fallthru
    _
  // Predicated region
  $region22: #{cnn_classifier_forward.1} parent=0 // pred_check
    _
  $region23: #{cnn_classifier_forward.1} parent=0 // pred_check_branch
    %22 = sbr.rel (0) target = $region25
  $region24: #{cnn_classifier_forward.1} parent=0 // pred_region
    _
  $region25: #{cnn_classifier_forward.1} parent=0 // pred_fallthru
    _
  %v24 = vld [vmem:[%s0] sm:$0xff]
  %v25 = vld [vmem:[%s0 + $0x8] sm:$0xf]
  %v27 = vunpack.c.l.b16 %v24
  %v28 = vunpack.c.h.b16 %v24
  %v29 = vpack.c.b16 %v27, %v27
  %v30 = vpack.c.b16 %v28, %v28
  %31 = vrot.lane.b32.xlu0 %v29, 96
  %v32 = vpop.permute.xlu0 %31
  %33 = vrot.lane.b32.xlu0 %v30, 96
  %v34 = vpop.permute.xlu0 %33
  %vm35 = vcmask 785408
  %v36 = vsel %vm35, %v32, %v34
  %37 = vrot.lane.b32.xlu0 %v29, 64
  %v38 = vpop.permute.xlu0 %37
  %39 = vrot.lane.b32.xlu0 %v30, 64
  %v40 = vpop.permute.xlu0 %39
  %vm41 = vcmask 523264
  %v42 = vsel %vm41, %v38, %v40
  %43 = vrot.lane.b32.xlu0 %v29, 32
  %v44 = vpop.permute.xlu0 %43
  %45 = vrot.lane.b32.xlu0 %v30, 32
  %v46 = vpop.permute.xlu0 %45
  %vm47 = vcmask 261120
  %v48 = vsel %vm47, %v44, %v46
  %v50 = vunpack.c.l.b16 %v25
  %v51 = vpack.c.b16 %v50, %v50
  %52 = vrot.lane.b32.xlu0 %v51, 96
  %v53 = vpop.permute.xlu0 %52
  %v54 = vsel %vm35, %v34, %v53
  %55 = vrot.lane.b32.xlu0 %v51, 64
  %v56 = vpop.permute.xlu0 %55
  %v57 = vsel %vm41, %v40, %v56
  %vm59 = vcmask 1043456
  %v62 = vsel %vm59, %v29, %v36
  %v66 = vsel %vm59, %v30, %v34
  %v69 = vsel %vm59, %v42, %v48
  %v73 = vsel %vm59, %v40, %v46
  %v75 = vsel %vm59, %v30, %v54
  %v79 = vsel %vm59, %v51, %v53
  %v80 = vld [vmem:[%s1] sm:$0xff]
  %v81 = vld [vmem:[%s1 + $0x8] sm:$0xff]
  %v82 = vld [vmem:[%s1 + $0x10] sm:$0xff]
  %v83 = vld [vmem:[%s1 + $0x18] sm:$0xff]
  %v84 = vld [vmem:[%s1 + $0x20] sm:$0xff]
  %v85 = vld [vmem:[%s1 + $0x28] sm:$0xff]
  %v86 = vld [vmem:[%s1 + $0x30] sm:$0xff]
  %v87 = vld [vmem:[%s1 + $0x38] sm:$0xff]
  %v88 = vld [vmem:[%s1 + $0x40] sm:$0xff]
  %v89 = vld [vmem:[%s1 + $0x48] sm:$0xff]
  %v90 = vld [vmem:[%s1 + $0x50] sm:$0xff]
  %v91 = vld [vmem:[%s1 + $0x58] sm:$0xff]
  %v92 = vld [vmem:[%s1 + $0x60] sm:$0xff]
  %v93 = vld [vmem:[%s1 + $0x68] sm:$0xff]
  %v94 = vld [vmem:[%s1 + $0x70] sm:$0xff]
  %v95 = vld [vmem:[%s1 + $0x78] sm:$0xff]
  %v96 = vld [vmem:[%s1 + $0x80] sm:$0xff]
  %v97 = vld [vmem:[%s1 + $0x88] sm:$0xff]
  %v98 = vld [vmem:[%s1 + $0x90] sm:$0xff]
  %v99 = vld [vmem:[%s1 + $0x98] sm:$0xff]
  %v100 = vld [vmem:[%s1 + $0xa0] sm:$0xff]
  %v101 = vld [vmem:[%s1 + $0xa8] sm:$0xff]
  %v102 = vld [vmem:[%s1 + $0xb0] sm:$0xff]
  %v103 = vld [vmem:[%s1 + $0xb8] sm:$0xff]
  %v104 = vld [vmem:[%s1 + $0xc0] sm:$0xff]
  %v105 = vld [vmem:[%s1 + $0xc8] sm:$0xff]
  %v106 = vld [vmem:[%s1 + $0xd0] sm:$0xff]
  %v107 = vld [vmem:[%s1 + $0xd8] sm:$0xff]
  %v108 = vld [vmem:[%s1 + $0xe0] sm:$0xff]
  %v109 = vld [vmem:[%s1 + $0xe8] sm:$0xff]
  %v110 = vld [vmem:[%s1 + $0xf0] sm:$0xff]
  %v111 = vld [vmem:[%s1 + $0xf8] sm:$0xff]
  %v112 = vld [vmem:[%s1 + $0x100] sm:$0xff]
  %v113 = vld [vmem:[%s1 + $0x108] sm:$0xff]
  %v114 = vld [vmem:[%s1 + $0x110] sm:$0xff]
  %v115 = vld [vmem:[%s1 + $0x118] sm:$0xff]
  %v116 = vld [vmem:[%s1 + $0x120] sm:$0xff]
  %v117 = vld [vmem:[%s1 + $0x128] sm:$0xff]
  %v118 = vld [vmem:[%s1 + $0x130] sm:$0xff]
  %v119 = vld [vmem:[%s1 + $0x138] sm:$0xff]
  %v160 = vunpack.c.l.b16 %v80
  %v161 = vunpack.c.h.b16 %v80
  %v162 = vunpack.c.l.b16 %v81
  %v163 = vunpack.c.h.b16 %v81
  %v164 = vunpack.c.l.b16 %v82
  %v165 = vunpack.c.h.b16 %v82
  %v166 = vunpack.c.l.b16 %v83
  %v167 = vunpack.c.h.b16 %v83
  %v168 = vunpack.c.l.b16 %v84
  %v169 = vunpack.c.h.b16 %v84
  %v170 = vunpack.c.l.b16 %v85
  %v171 = vunpack.c.h.b16 %v85
  %v172 = vunpack.c.l.b16 %v86
  %v173 = vunpack.c.h.b16 %v86
  %v174 = vunpack.c.l.b16 %v87
  %v175 = vunpack.c.h.b16 %v87
  %v176 = vunpack.c.l.b16 %v88
  %v177 = vunpack.c.h.b16 %v88
  %v178 = vunpack.c.l.b16 %v89
  %v179 = vunpack.c.h.b16 %v89
  %v180 = vunpack.c.l.b16 %v90
  %v181 = vunpack.c.h.b16 %v90
  %v182 = vunpack.c.l.b16 %v91
  %v183 = vunpack.c.h.b16 %v91
  %v184 = vunpack.c.l.b16 %v92
  %v185 = vunpack.c.h.b16 %v92
  %v186 = vunpack.c.l.b16 %v93
  %v187 = vunpack.c.h.b16 %v93
  %v188 = vunpack.c.l.b16 %v94
  %v189 = vunpack.c.h.b16 %v94
  %v190 = vunpack.c.l.b16 %v95
  %v191 = vunpack.c.h.b16 %v95
  %v192 = vunpack.c.l.b16 %v96
  %v193 = vunpack.c.h.b16 %v96
  %v194 = vunpack.c.l.b16 %v97
  %v195 = vunpack.c.h.b16 %v97
  %v196 = vunpack.c.l.b16 %v98
  %v197 = vunpack.c.h.b16 %v98
  %v198 = vunpack.c.l.b16 %v99
  %v199 = vunpack.c.h.b16 %v99
  %v200 = vunpack.c.l.b16 %v100
  %v201 = vunpack.c.h.b16 %v100
  %v202 = vunpack.c.l.b16 %v101
  %v203 = vunpack.c.h.b16 %v101
  %v204 = vunpack.c.l.b16 %v102
  %v205 = vunpack.c.h.b16 %v102
  %v206 = vunpack.c.l.b16 %v103
  %v207 = vunpack.c.h.b16 %v103
  %v208 = vunpack.c.l.b16 %v104
  %v209 = vunpack.c.h.b16 %v104
  %v210 = vunpack.c.l.b16 %v105
  %v211 = vunpack.c.h.b16 %v105
  %v212 = vunpack.c.l.b16 %v106
  %v213 = vunpack.c.h.b16 %v106
  %v214 = vunpack.c.l.b16 %v107
  %v215 = vunpack.c.h.b16 %v107
  %v216 = vunpack.c.l.b16 %v108
  %v217 = vunpack.c.h.b16 %v108
  %v218 = vunpack.c.l.b16 %v109
  %v219 = vunpack.c.h.b16 %v109
  %v220 = vunpack.c.l.b16 %v110
  %v221 = vunpack.c.h.b16 %v110
  %v222 = vunpack.c.l.b16 %v111
  %v223 = vunpack.c.h.b16 %v111
  %v224 = vunpack.c.l.b16 %v112
  %v225 = vunpack.c.h.b16 %v112
  %v226 = vunpack.c.l.b16 %v113
  %v227 = vunpack.c.h.b16 %v113
  %v228 = vunpack.c.l.b16 %v114
  %v229 = vunpack.c.h.b16 %v114
  %v230 = vunpack.c.l.b16 %v115
  %v231 = vunpack.c.h.b16 %v115
  %v232 = vunpack.c.l.b16 %v116
  %v233 = vunpack.c.h.b16 %v116
  %v234 = vunpack.c.l.b16 %v117
  %v235 = vunpack.c.h.b16 %v117
  %v236 = vunpack.c.l.b16 %v118
  %v237 = vunpack.c.h.b16 %v118
  %v238 = vunpack.c.l.b16 %v119
  %v239 = vunpack.c.h.b16 %v119
  %v240 = vpack.c.b16 %v164, %v160
  %v241 = vpack.c.b16 %v165, %v161
  %v242 = vpack.c.b16 %v166, %v162
  %v243 = vpack.c.b16 %v167, %v163
  %v244 = vpack.c.b16 %v172, %v168
  %v245 = vpack.c.b16 %v173, %v169
  %v246 = vpack.c.b16 %v174, %v170
  %v247 = vpack.c.b16 %v175, %v171
  %v248 = vpack.c.b16 %v180, %v176
  %v249 = vpack.c.b16 %v181, %v177
  %v250 = vpack.c.b16 %v182, %v178
  %v251 = vpack.c.b16 %v183, %v179
  %v252 = vpack.c.b16 %v188, %v184
  %v253 = vpack.c.b16 %v189, %v185
  %v254 = vpack.c.b16 %v190, %v186
  %v255 = vpack.c.b16 %v191, %v187
  %v256 = vpack.c.b16 %v196, %v192
  %v257 = vpack.c.b16 %v197, %v193
  %v258 = vpack.c.b16 %v198, %v194
  %v259 = vpack.c.b16 %v199, %v195
  %v260 = vpack.c.b16 %v204, %v200
  %v261 = vpack.c.b16 %v205, %v201
  %v262 = vpack.c.b16 %v206, %v202
  %v263 = vpack.c.b16 %v207, %v203
  %v264 = vpack.c.b16 %v212, %v208
  %v265 = vpack.c.b16 %v213, %v209
  %v266 = vpack.c.b16 %v214, %v210
  %v267 = vpack.c.b16 %v215, %v211
  %v268 = vpack.c.b16 %v220, %v216
  %v269 = vpack.c.b16 %v221, %v217
  %v270 = vpack.c.b16 %v222, %v218
  %v271 = vpack.c.b16 %v223, %v219
  %v272 = vpack.c.b16 %v228, %v224
  %v273 = vpack.c.b16 %v229, %v225
  %v274 = vpack.c.b16 %v230, %v226
  %v275 = vpack.c.b16 %v231, %v227
  %v276 = vpack.c.b16 %v236, %v232
  %v277 = vpack.c.b16 %v237, %v233
  %v278 = vpack.c.b16 %v238, %v234
  %v279 = vpack.c.b16 %v239, %v235
  %vm320 = vcmask 261120
  %v321 = vsel %vm320, %v66, 0
  %v323 = vsel %vm320, %v73, 0
  %v325 = vsel %vm320, %v79, 0
  %v328 = vsel %vm320, %v56, 0
  %330 = vmatprep.subr.bf16.mxu0 %v241
  %331 = vmatpush1.bf16.msra.mxu0 %v240
  %332 = vmatprep.subr.bf16.mxu0 %v245
  %333 = vmatpush1.bf16.msra.mxu0 %v244
  %334 = vmatprep.subr.bf16.mxu0 %v249
  %335 = vmatpush1.bf16.msra.mxu0 %v248
  %336 = vmatprep.subr.bf16.mxu0 %v253
  %337 = vmatpush1.bf16.msra.mxu0 %v252
  %338 = vmatprep.subr.bf16.mxu0 %v257
  %339 = vmatpush1.bf16.msra.mxu0 %v256
  %340 = vmatprep.subr.bf16.mxu0 %v261
  %341 = vmatpush1.bf16.msra.mxu0 %v260
  %342 = vmatprep.subr.bf16.mxu0 %v265
  %343 = vmatpush1.bf16.msra.mxu0 %v264
  %344 = vmatprep.subr.bf16.mxu0 %v269
  %345 = vmatpush1.bf16.msra.mxu0 %v268
  %346 = vmatprep.subr.bf16.mxu0 %v273
  %347 = vmatpush1.bf16.msra.mxu0 %v272
  %348 = vmatprep.subr.bf16.mxu0 %v277
  %349 = vmatpush1.bf16.msra.mxu0 %v276
  %350 = vmatprep.subr.bf16.mxu0 0
  %351 = vmatpush1.bf16.msra.mxu0 0
  %352 = vmatprep.subr.bf16.mxu0 0
  %353 = vmatpush1.bf16.msra.mxu0 0
  %354 = vmatprep.subr.bf16.mxu0 0
  %355 = vmatpush1.bf16.msra.mxu0 0
  %356 = vmatprep.subr.bf16.mxu0 0
  %357 = vmatpush1.bf16.msra.mxu0 0
  %358 = vmatprep.subr.bf16.mxu0 0
  %359 = vmatpush1.bf16.msra.mxu0 0
  %360 = vmatprep.subr.bf16.mxu0 0
  %361 = vmatpush1.bf16.msra.mxu0 0
  %362 = vmatprep.mubr.bf16.mxu0 %v321
  %363 = vmatmul.mubr.bf16.gmra.mrb[0].mxu0 %v62
  %v364 = vpop.f32.mrb[0].mxu0
  %v365 = vadd.f32 0.0, %v364
  %v366 = vpop.f32.mrb[0].mxu0
  %v367 = vadd.f32 0.0, %v366
  %v368 = vpop.f32.mrb[0].mxu0
  %v369 = vadd.f32 0.0, %v368
  %v370 = vpop.f32.mrb[0].mxu0
  %v371 = vadd.f32 0.0, %v370
  %372 = vmatprep.mubr.bf16.mxu0 %v323
  %373 = vmatmul.mubr.bf16.gmra.mrb[0].mxu0 %v69
  %v374 = vpop.f32.mrb[0].mxu0
  %v375 = vadd.f32 0.0, %v374
  %v376 = vpop.f32.mrb[0].mxu0
  %v377 = vadd.f32 0.0, %v376
  %v378 = vpop.f32.mrb[0].mxu0
  %v379 = vadd.f32 0.0, %v378
  %v380 = vpop.f32.mrb[0].mxu0
  %v381 = vadd.f32 0.0, %v380
  %382 = vmatprep.mubr.bf16.mxu0 %v325
  %383 = vmatmul.mubr.bf16.gmra.mrb[0].mxu0 %v75
  %v384 = vpop.f32.mrb[0].mxu0
  %v385 = vadd.f32 0.0, %v384
  %v386 = vpop.f32.mrb[0].mxu0
  %v387 = vadd.f32 0.0, %v386
  %v388 = vpop.f32.mrb[0].mxu0
  %v389 = vadd.f32 0.0, %v388
  %v390 = vpop.f32.mrb[0].mxu0
  %v391 = vadd.f32 0.0, %v390
  %392 = vmatprep.mubr.bf16.mxu0 %v328
  %393 = vmatmul.mubr.bf16.gmra.mrb[0].mxu0 %v57
  %v394 = vpop.f32.mrb[0].mxu0
  %v395 = vadd.f32 0.0, %v394
  %v396 = vpop.f32.mrb[0].mxu0
  %v397 = vadd.f32 0.0, %v396
  %v398 = vpop.f32.mrb[0].mxu0
  %v399 = vpop.f32.mrb[0].mxu0
  %400 = vdwg.mxu0
  %401 = vmatprep.subr.bf16.mxu0 %v243
  %402 = vmatpush1.bf16.msra.mxu0 %v242
  %403 = vmatprep.subr.bf16.mxu0 %v247
  %404 = vmatpush1.bf16.msra.mxu0 %v246
  %405 = vmatprep.subr.bf16.mxu0 %v251
  %406 = vmatpush1.bf16.msra.mxu0 %v250
  %407 = vmatprep.subr.bf16.mxu0 %v255
  %408 = vmatpush1.bf16.msra.mxu0 %v254
  %409 = vmatprep.subr.bf16.mxu0 %v259
  %410 = vmatpush1.bf16.msra.mxu0 %v258
  %411 = vmatprep.subr.bf16.mxu0 %v263
  %412 = vmatpush1.bf16.msra.mxu0 %v262
  %413 = vmatprep.subr.bf16.mxu0 %v267
  %414 = vmatpush1.bf16.msra.mxu0 %v266
  %415 = vmatprep.subr.bf16.mxu0 %v271
  %416 = vmatpush1.bf16.msra.mxu0 %v270
  %417 = vmatprep.subr.bf16.mxu0 %v275
  %418 = vmatpush1.bf16.msra.mxu0 %v274
  %419 = vmatprep.subr.bf16.mxu0 %v279
  %420 = vmatpush1.bf16.msra.mxu0 %v278
  %421 = vmatprep.subr.bf16.mxu0 0
  %422 = vmatpush1.bf16.msra.mxu0 0
  %423 = vmatprep.subr.bf16.mxu0 0
  %424 = vmatpush1.bf16.msra.mxu0 0
  %425 = vmatprep.subr.bf16.mxu0 0
  %426 = vmatpush1.bf16.msra.mxu0 0
  %427 = vmatprep.subr.bf16.mxu0 0
  %428 = vmatpush1.bf16.msra.mxu0 0
  %429 = vmatprep.subr.bf16.mxu0 0
  %430 = vmatpush1.bf16.msra.mxu0 0
  %431 = vmatprep.subr.bf16.mxu0 0
  %432 = vmatpush1.bf16.msra.mxu0 0
  %433 = vmatprep.mubr.bf16.mxu0 %v321
  %434 = vmatmul.mubr.bf16.gmra.mrb[0].mxu0 %v62
  %v435 = vpop.f32.mrb[0].mxu0
  %v436 = vadd.f32 0.0, %v435
  %v437 = vpop.f32.mrb[0].mxu0
  %v438 = vadd.f32 0.0, %v437
  %v439 = vpop.f32.mrb[0].mxu0
  %v440 = vadd.f32 0.0, %v439
  %v441 = vpop.f32.mrb[0].mxu0
  %v442 = vadd.f32 0.0, %v441
  %443 = vmatprep.mubr.bf16.mxu0 %v323
  %444 = vmatmul.mubr.bf16.gmra.mrb[0].mxu0 %v69
  %v445 = vpop.f32.mrb[0].mxu0
  %v446 = vadd.f32 0.0, %v445
  %v447 = vpop.f32.mrb[0].mxu0
  %v448 = vadd.f32 0.0, %v447
  %v449 = vpop.f32.mrb[0].mxu0
  %v450 = vadd.f32 0.0, %v449
  %v451 = vpop.f32.mrb[0].mxu0
  %v452 = vadd.f32 0.0, %v451
  %453 = vmatprep.mubr.bf16.mxu0 %v325
  %454 = vmatmul.mubr.bf16.gmra.mrb[0].mxu0 %v75
  %v455 = vpop.f32.mrb[0].mxu0
  %v456 = vadd.f32 0.0, %v455
  %v457 = vpop.f32.mrb[0].mxu0
  %v458 = vadd.f32 0.0, %v457
  %v459 = vpop.f32.mrb[0].mxu0
  %v460 = vadd.f32 0.0, %v459
  %v461 = vpop.f32.mrb[0].mxu0
  %v462 = vadd.f32 0.0, %v461
  %463 = vmatprep.mubr.bf16.mxu0 %v328
  %464 = vmatmul.mubr.bf16.gmra.mrb[0].mxu0 %v57
  %v465 = vpop.f32.mrb[0].mxu0
  %v466 = vadd.f32 0.0, %v465
  %v467 = vpop.f32.mrb[0].mxu0
  %v468 = vadd.f32 0.0, %v467
  %v469 = vpop.f32.mrb[0].mxu0
  %v470 = vpop.f32.mrb[0].mxu0
  %471 = vdwg.mxu0
  %v472 = vld [vmem:[%s3] sm:$0xf]
  %v474 = vlaneseq
  %v475 = vshrl.u32 %v474, 7
  %v476 = vsub.s32 0, %v475
  %v477 = vrot.slane %v472, %v476
  %v478 = vlaneseq
  %v479 = vshrl.u32 %v478, 7
  %v480 = vsub.s32 1, %v479
  %v481 = vrot.slane %v472, %v480
  %v482 = vlaneseq
  %v483 = vshrl.u32 %v482, 7
  %v484 = vsub.s32 2, %v483
  %v485 = vrot.slane %v472, %v484
  %v486 = vlaneseq
  %v487 = vshrl.u32 %v486, 7
  %v488 = vsub.s32 3, %v487
  %v489 = vrot.slane %v472, %v488
  %v494 = vadd.f32 %v365, %v477
  %v495 = vadd.f32 %v367, %v481
  %v496 = vadd.f32 %v436, %v485
  %v497 = vadd.f32 %v438, %v489
  %s498 = scalar_lea.vmem %s3, 4
  %v499 = vld [vmem:[%s498] sm:$0xf]
  %v501 = vlaneseq
  %v502 = vshrl.u32 %v501, 7
  %v503 = vsub.s32 0, %v502
  %v504 = vrot.slane %v499, %v503
  %v505 = vlaneseq
  %v506 = vshrl.u32 %v505, 7
  %v507 = vsub.s32 1, %v506
  %v508 = vrot.slane %v499, %v507
  %v509 = vlaneseq
  %v510 = vshrl.u32 %v509, 7
  %v511 = vsub.s32 2, %v510
  %v512 = vrot.slane %v499, %v511
  %v513 = vlaneseq
  %v514 = vshrl.u32 %v513, 7
  %v515 = vsub.s32 3, %v514
  %v516 = vrot.slane %v499, %v515
  %v521 = vadd.f32 %v369, %v504
  %v522 = vadd.f32 %v371, %v508
  %v523 = vadd.f32 %v440, %v512
  %v524 = vadd.f32 %v442, %v516
  %v525 = vmax.f32 %v494, %v521
  %v526 = vmax.f32 %v495, %v522
  %v527 = vmax.f32 %v496, %v523
  %v528 = vmax.f32 %v497, %v524
  %s529 = scalar_lea.vmem %s3, 8
  %v530 = vld [vmem:[%s529] sm:$0xf]
  %v532 = vlaneseq
  %v533 = vshrl.u32 %v532, 7
  %v534 = vsub.s32 0, %v533
  %v535 = vrot.slane %v530, %v534
  %v536 = vlaneseq
  %v537 = vshrl.u32 %v536, 7
  %v538 = vsub.s32 1, %v537
  %v539 = vrot.slane %v530, %v538
  %v540 = vlaneseq
  %v541 = vshrl.u32 %v540, 7
  %v542 = vsub.s32 2, %v541
  %v543 = vrot.slane %v530, %v542
  %v544 = vlaneseq
  %v545 = vshrl.u32 %v544, 7
  %v546 = vsub.s32 3, %v545
  %v547 = vrot.slane %v530, %v546
  %v552 = vadd.f32 %v375, %v535
  %v553 = vadd.f32 %v377, %v539
  %v554 = vadd.f32 %v446, %v543
  %v555 = vadd.f32 %v448, %v547
  %v556 = vmax.f32 %v525, %v552
  %v557 = vmax.f32 %v526, %v553
  %v558 = vmax.f32 %v527, %v554
  %v559 = vmax.f32 %v528, %v555
  %s560 = scalar_lea.vmem %s3, 12
  %v561 = vld [vmem:[%s560] sm:$0xf]
  %v563 = vlaneseq
  %v564 = vshrl.u32 %v563, 7
  %v565 = vsub.s32 0, %v564
  %v566 = vrot.slane %v561, %v565
  %v567 = vlaneseq
  %v568 = vshrl.u32 %v567, 7
  %v569 = vsub.s32 1, %v568
  %v570 = vrot.slane %v561, %v569
  %v571 = vlaneseq
  %v572 = vshrl.u32 %v571, 7
  %v573 = vsub.s32 2, %v572
  %v574 = vrot.slane %v561, %v573
  %v575 = vlaneseq
  %v576 = vshrl.u32 %v575, 7
  %v577 = vsub.s32 3, %v576
  %v578 = vrot.slane %v561, %v577
  %v583 = vadd.f32 %v379, %v566
  %v584 = vadd.f32 %v381, %v570
  %v585 = vadd.f32 %v450, %v574
  %v586 = vadd.f32 %v452, %v578
  %v587 = vmax.f32 %v556, %v583
  %v588 = vmax.f32 %v557, %v584
  %v589 = vmax.f32 %v558, %v585
  %v590 = vmax.f32 %v559, %v586
  %s591 = scalar_lea.vmem %s3, 16
  %v592 = vld [vmem:[%s591] sm:$0xf]
  %v594 = vlaneseq
  %v595 = vshrl.u32 %v594, 7
  %v596 = vsub.s32 0, %v595
  %v597 = vrot.slane %v592, %v596
  %v598 = vlaneseq
  %v599 = vshrl.u32 %v598, 7
  %v600 = vsub.s32 1, %v599
  %v601 = vrot.slane %v592, %v600
  %v602 = vlaneseq
  %v603 = vshrl.u32 %v602, 7
  %v604 = vsub.s32 2, %v603
  %v605 = vrot.slane %v592, %v604
  %v606 = vlaneseq
  %v607 = vshrl.u32 %v606, 7
  %v608 = vsub.s32 3, %v607
  %v609 = vrot.slane %v592, %v608
  %v614 = vadd.f32 %v385, %v597
  %v615 = vadd.f32 %v387, %v601
  %v616 = vadd.f32 %v456, %v605
  %v617 = vadd.f32 %v458, %v609
  %v618 = vmax.f32 %v587, %v614
  %v619 = vmax.f32 %v588, %v615
  %v620 = vmax.f32 %v589, %v616
  %v621 = vmax.f32 %v590, %v617
  %s622 = scalar_lea.vmem %s3, 20
  %v623 = vld [vmem:[%s622] sm:$0xf]
  %v625 = vlaneseq
  %v626 = vshrl.u32 %v625, 7
  %v627 = vsub.s32 0, %v626
  %v628 = vrot.slane %v623, %v627
  %v629 = vlaneseq
  %v630 = vshrl.u32 %v629, 7
  %v631 = vsub.s32 1, %v630
  %v632 = vrot.slane %v623, %v631
  %v633 = vlaneseq
  %v634 = vshrl.u32 %v633, 7
  %v635 = vsub.s32 2, %v634
  %v636 = vrot.slane %v623, %v635
  %v637 = vlaneseq
  %v638 = vshrl.u32 %v637, 7
  %v639 = vsub.s32 3, %v638
  %v640 = vrot.slane %v623, %v639
  %v645 = vadd.f32 %v389, %v628
  %v646 = vadd.f32 %v391, %v632
  %v647 = vadd.f32 %v460, %v636
  %v648 = vadd.f32 %v462, %v640
  %v649 = vmax.f32 %v618, %v645
  %v650 = vmax.f32 %v619, %v646
  %v651 = vmax.f32 %v620, %v647
  %v652 = vmax.f32 %v621, %v648
  %s653 = scalar_lea.vmem %s3, 24
  %v654 = vld [vmem:[%s653] sm:$0xf]
  %v656 = vlaneseq
  %v657 = vshrl.u32 %v656, 7
  %v658 = vsub.s32 0, %v657
  %v659 = vrot.slane %v654, %v658
  %v660 = vlaneseq
  %v661 = vshrl.u32 %v660, 7
  %v662 = vsub.s32 1, %v661
  %v663 = vrot.slane %v654, %v662
  %v664 = vlaneseq
  %v665 = vshrl.u32 %v664, 7
  %v666 = vsub.s32 2, %v665
  %v667 = vrot.slane %v654, %v666
  %v668 = vlaneseq
  %v669 = vshrl.u32 %v668, 7
  %v670 = vsub.s32 3, %v669
  %v671 = vrot.slane %v654, %v670
  %v676 = vadd.f32 %v395, %v659
  %v677 = vadd.f32 %v397, %v663
  %v678 = vadd.f32 %v466, %v667
  %v679 = vadd.f32 %v468, %v671
  %v680 = vmax.f32 %v649, %v676
  %v681 = vmax.f32 %v650, %v677
  %v682 = vmax.f32 %v651, %v678
  %v683 = vmax.f32 %v652, %v679
  %v684 = vld [vmem:[%s2] sm:$0xf]
  %v686 = vlaneseq
  %v687 = vshrl.u32 %v686, 7
  %v688 = vsub.s32 0, %v687
  %v689 = vrot.slane %v684, %v688
  %v690 = vlaneseq
  %v691 = vshrl.u32 %v690, 7
  %v692 = vsub.s32 1, %v691
  %v693 = vrot.slane %v684, %v692
  %v694 = vlaneseq
  %v695 = vshrl.u32 %v694, 7
  %v696 = vsub.s32 2, %v695
  %v697 = vrot.slane %v684, %v696
  %v698 = vlaneseq
  %v699 = vshrl.u32 %v698, 7
  %v700 = vsub.s32 3, %v699
  %v701 = vrot.slane %v684, %v700
  %v706 = vadd.f32 %v680, %v689
  %v707 = vadd.f32 %v681, %v693
  %v708 = vadd.f32 %v682, %v697
  %v709 = vadd.f32 %v683, %v701
  %v710 = vmax.f32 %v706, 0.0
  %v711 = vmax.f32 %v707, 0.0
  %v712 = vmax.f32 %v708, 0.0
  %v713 = vmax.f32 %v709, 0.0
  %v714 = vpack.c.bf16 %v710, %v710
  %v715 = vpack.c.bf16 %v711, %v711
  %v716 = vpack.c.bf16 %v712, %v712
  %v717 = vpack.c.bf16 %v713, %v713
  %v718 = vld [vmem:[%s4] sm:$0xf]
  %v719 = vld [vmem:[%s4 + $0x4] sm:$0xf]
  %v720 = vld [vmem:[%s4 + $0x8] sm:$0xf]
  %v721 = vld [vmem:[%s4 + $0xc] sm:$0xf]
  %v722 = vld [vmem:[%s4 + $0x10] sm:$0xf]
  %v723 = vld [vmem:[%s4 + $0x14] sm:$0xf]
  %v724 = vld [vmem:[%s4 + $0x18] sm:$0xf]
  %v725 = vld [vmem:[%s4 + $0x1c] sm:$0xf]
  %v726 = vld [vmem:[%s4 + $0x20] sm:$0xf]
  %v727 = vld [vmem:[%s4 + $0x24] sm:$0xf]
  %v728 = vld [vmem:[%s4 + $0x28] sm:$0xf]
  %v729 = vld [vmem:[%s4 + $0x2c] sm:$0xf]
  %v730 = vld [vmem:[%s4 + $0x30] sm:$0xf]
  %v731 = vld [vmem:[%s4 + $0x34] sm:$0xf]
  %v732 = vld [vmem:[%s4 + $0x38] sm:$0xf]
  %v733 = vld [vmem:[%s4 + $0x3c] sm:$0xf]
  %v734 = vld [vmem:[%s4 + $0x40] sm:$0xf]
  %v735 = vld [vmem:[%s4 + $0x44] sm:$0xf]
  %v736 = vld [vmem:[%s4 + $0x48] sm:$0xf]
  %v737 = vld [vmem:[%s4 + $0x4c] sm:$0xf]
  %v738 = vld [vmem:[%s4 + $0x50] sm:$0xf]
  %v739 = vld [vmem:[%s4 + $0x54] sm:$0xf]
  %v740 = vld [vmem:[%s4 + $0x58] sm:$0xf]
  %v741 = vld [vmem:[%s4 + $0x5c] sm:$0xf]
  %v742 = vld [vmem:[%s4 + $0x60] sm:$0xf]
  %v743 = vld [vmem:[%s4 + $0x64] sm:$0xf]
  %v744 = vld [vmem:[%s4 + $0x68] sm:$0xf]
  %v745 = vld [vmem:[%s4 + $0x6c] sm:$0xf]
  %v746 = vld [vmem:[%s4 + $0x70] sm:$0xf]
  %v747 = vld [vmem:[%s4 + $0x74] sm:$0xf]
  %v748 = vld [vmem:[%s4 + $0x78] sm:$0xf]
  %v749 = vld [vmem:[%s4 + $0x7c] sm:$0xf]
  %v750 = vld [vmem:[%s4 + $0x80] sm:$0xf]
  %v751 = vld [vmem:[%s4 + $0x84] sm:$0xf]
  %v752 = vld [vmem:[%s4 + $0x88] sm:$0xf]
  %v753 = vld [vmem:[%s4 + $0x8c] sm:$0xf]
  %v754 = vld [vmem:[%s4 + $0x90] sm:$0xf]
  %v755 = vld [vmem:[%s4 + $0x94] sm:$0xf]
  %v756 = vld [vmem:[%s4 + $0x98] sm:$0xf]
  %v757 = vld [vmem:[%s4 + $0x9c] sm:$0xf]
  %v758 = vld [vmem:[%s4 + $0xa0] sm:$0xf]
  %v759 = vld [vmem:[%s4 + $0xa4] sm:$0xf]
  %v760 = vld [vmem:[%s4 + $0xa8] sm:$0xf]
  %v761 = vld [vmem:[%s4 + $0xac] sm:$0xf]
  %v762 = vld [vmem:[%s4 + $0xb0] sm:$0xf]
  %v763 = vld [vmem:[%s4 + $0xb4] sm:$0xf]
  %v764 = vld [vmem:[%s4 + $0xb8] sm:$0xf]
  %v765 = vld [vmem:[%s4 + $0xbc] sm:$0xf]
  %v766 = vld [vmem:[%s4 + $0xc0] sm:$0xf]
  %v767 = vld [vmem:[%s4 + $0xc4] sm:$0xf]
  %v768 = vld [vmem:[%s4 + $0xc8] sm:$0xf]
  %v769 = vld [vmem:[%s4 + $0xcc] sm:$0xf]
  %v770 = vld [vmem:[%s4 + $0xd0] sm:$0xf]
  %v771 = vld [vmem:[%s4 + $0xd4] sm:$0xf]
  %v772 = vld [vmem:[%s4 + $0xd8] sm:$0xf]
  %v773 = vld [vmem:[%s4 + $0xdc] sm:$0xf]
  %v774 = vld [vmem:[%s4 + $0xe0] sm:$0xf]
  %v775 = vld [vmem:[%s4 + $0xe4] sm:$0xf]
  %v776 = vld [vmem:[%s4 + $0xe8] sm:$0xf]
  %v777 = vld [vmem:[%s4 + $0xec] sm:$0xf]
  %v778 = vld [vmem:[%s4 + $0xf0] sm:$0xf]
  %v779 = vld [vmem:[%s4 + $0xf4] sm:$0xf]
  %v780 = vld [vmem:[%s4 + $0xf8] sm:$0xf]
  %v781 = vld [vmem:[%s4 + $0xfc] sm:$0xf]
  %v782 = vld [vmem:[%s5] sm:$0x1]
  %v784 = vlaneseq
  %v785 = vshrl.u32 %v784, 7
  %v786 = vsub.s32 0, %v785
  %v787 = vrot.slane %v782, %v786
  %v853 = vunpack.c.l.b16 %v718
  %v854 = vunpack.c.l.b16 %v719
  %v855 = vunpack.c.l.b16 %v720
  %v856 = vunpack.c.l.b16 %v721
  %v857 = vunpack.c.l.b16 %v722
  %v858 = vunpack.c.l.b16 %v723
  %v859 = vunpack.c.l.b16 %v724
  %v860 = vunpack.c.l.b16 %v725
  %v861 = vunpack.c.l.b16 %v726
  %v862 = vunpack.c.l.b16 %v727
  %v863 = vunpack.c.l.b16 %v728
  %v864 = vunpack.c.l.b16 %v729
  %v865 = vunpack.c.l.b16 %v730
  %v866 = vunpack.c.l.b16 %v731
  %v867 = vunpack.c.l.b16 %v732
  %v868 = vunpack.c.l.b16 %v733
  %v869 = vunpack.c.l.b16 %v734
  %v870 = vunpack.c.l.b16 %v735
  %v871 = vunpack.c.l.b16 %v736
  %v872 = vunpack.c.l.b16 %v737
  %v873 = vunpack.c.l.b16 %v738
  %v874 = vunpack.c.l.b16 %v739
  %v875 = vunpack.c.l.b16 %v740
  %v876 = vunpack.c.l.b16 %v741
  %v877 = vunpack.c.l.b16 %v742
  %v878 = vunpack.c.l.b16 %v743
  %v879 = vunpack.c.l.b16 %v744
  %v880 = vunpack.c.l.b16 %v745
  %v881 = vunpack.c.l.b16 %v746
  %v882 = vunpack.c.l.b16 %v747
  %v883 = vunpack.c.l.b16 %v748
  %v884 = vunpack.c.l.b16 %v749
  %v885 = vunpack.c.l.b16 %v750
  %v886 = vunpack.c.l.b16 %v751
  %v887 = vunpack.c.l.b16 %v752
  %v888 = vunpack.c.l.b16 %v753
  %v889 = vunpack.c.l.b16 %v754
  %v890 = vunpack.c.l.b16 %v755
  %v891 = vunpack.c.l.b16 %v756
  %v892 = vunpack.c.l.b16 %v757
  %v893 = vunpack.c.l.b16 %v758
  %v894 = vunpack.c.l.b16 %v759
  %v895 = vunpack.c.l.b16 %v760
  %v896 = vunpack.c.l.b16 %v761
  %v897 = vunpack.c.l.b16 %v762
  %v898 = vunpack.c.l.b16 %v763
  %v899 = vunpack.c.l.b16 %v764
  %v900 = vunpack.c.l.b16 %v765
  %v901 = vunpack.c.l.b16 %v766
  %v902 = vunpack.c.l.b16 %v767
  %v903 = vunpack.c.l.b16 %v768
  %v904 = vunpack.c.l.b16 %v769
  %v905 = vunpack.c.l.b16 %v770
  %v906 = vunpack.c.l.b16 %v771
  %v907 = vunpack.c.l.b16 %v772
  %v908 = vunpack.c.l.b16 %v773
  %v909 = vunpack.c.l.b16 %v774
  %v910 = vunpack.c.l.b16 %v775
  %v911 = vunpack.c.l.b16 %v776
  %v912 = vunpack.c.l.b16 %v777
  %v913 = vunpack.c.l.b16 %v778
  %v914 = vunpack.c.l.b16 %v779
  %v915 = vunpack.c.l.b16 %v780
  %v916 = vunpack.c.l.b16 %v781
  %v917 = vpack.c.b16 %v854, %v853
  %v918 = vpack.c.b16 %v856, %v855
  %v919 = vpack.c.b16 %v858, %v857
  %v920 = vpack.c.b16 %v860, %v859
  %v921 = vpack.c.b16 %v862, %v861
  %v922 = vpack.c.b16 %v864, %v863
  %v923 = vpack.c.b16 %v866, %v865
  %v924 = vpack.c.b16 %v868, %v867
  %v925 = vpack.c.b16 %v870, %v869
  %v926 = vpack.c.b16 %v872, %v871
  %v927 = vpack.c.b16 %v874, %v873
  %v928 = vpack.c.b16 %v876, %v875
  %v929 = vpack.c.b16 %v878, %v877
  %v930 = vpack.c.b16 %v880, %v879
  %v931 = vpack.c.b16 %v882, %v881
  %v932 = vpack.c.b16 %v884, %v883
  %v933 = vpack.c.b16 %v886, %v885
  %v934 = vpack.c.b16 %v888, %v887
  %v935 = vpack.c.b16 %v890, %v889
  %v936 = vpack.c.b16 %v892, %v891
  %v937 = vpack.c.b16 %v894, %v893
  %v938 = vpack.c.b16 %v896, %v895
  %v939 = vpack.c.b16 %v898, %v897
  %v940 = vpack.c.b16 %v900, %v899
  %v941 = vpack.c.b16 %v902, %v901
  %v942 = vpack.c.b16 %v904, %v903
  %v943 = vpack.c.b16 %v906, %v905
  %v944 = vpack.c.b16 %v908, %v907
  %v945 = vpack.c.b16 %v910, %v909
  %v946 = vpack.c.b16 %v912, %v911
  %v947 = vpack.c.b16 %v914, %v913
  %v948 = vpack.c.b16 %v916, %v915
  %981 = vmatprep.subr.bf16.mxu0 0
  %982 = vmatpush1.bf16.msra.mxu0 %v917
  %983 = vmatprep.subr.bf16.mxu0 0
  %984 = vmatpush1.bf16.msra.mxu0 %v918
  %985 = vmatprep.subr.bf16.mxu0 0
  %986 = vmatpush1.bf16.msra.mxu0 %v919
  %987 = vmatprep.subr.bf16.mxu0 0
  %988 = vmatpush1.bf16.msra.mxu0 %v920
  %989 = vmatprep.subr.bf16.mxu0 0
  %990 = vmatpush1.bf16.msra.mxu0 %v921
  %991 = vmatprep.subr.bf16.mxu0 0
  %992 = vmatpush1.bf16.msra.mxu0 %v922
  %993 = vmatprep.subr.bf16.mxu0 0
  %994 = vmatpush1.bf16.msra.mxu0 %v923
  %995 = vmatprep.subr.bf16.mxu0 0
  %996 = vmatpush1.bf16.msra.mxu0 %v924
  %997 = vmatprep.subr.bf16.mxu0 0
  %998 = vmatpush1.bf16.msra.mxu0 %v925
  %999 = vmatprep.subr.bf16.mxu0 0
  %1000 = vmatpush1.bf16.msra.mxu0 %v926
  %1001 = vmatprep.subr.bf16.mxu0 0
  %1002 = vmatpush1.bf16.msra.mxu0 %v927
  %1003 = vmatprep.subr.bf16.mxu0 0
  %1004 = vmatpush1.bf16.msra.mxu0 %v928
  %1005 = vmatprep.subr.bf16.mxu0 0
  %1006 = vmatpush1.bf16.msra.mxu0 %v929
  %1007 = vmatprep.subr.bf16.mxu0 0
  %1008 = vmatpush1.bf16.msra.mxu0 %v930
  %1009 = vmatprep.subr.bf16.mxu0 0
  %1010 = vmatpush1.bf16.msra.mxu0 %v931
  %1011 = vmatprep.subr.bf16.mxu0 0
  %1012 = vmatpush1.bf16.msra.mxu0 %v932
  %1013 = vmatprep.mubr.bf16.mxu0 %v715
  %1014 = vmatmul.mubr.bf16.gmra.mrb[0].mxu0 %v714
  %v1015 = vpop.f32.mrb[0].mxu0
  %v1016 = vadd.f32 %v787, %v1015
  %v1017 = vpop.f32.mrb[0].mxu0
  %v1018 = vpop.f32.mrb[0].mxu0
  %v1019 = vpop.f32.mrb[0].mxu0
  %1020 = vdwg.mxu0
  %1021 = vmatprep.subr.bf16.mxu0 0
  %1022 = vmatpush1.bf16.msra.mxu0 %v933
  %1023 = vmatprep.subr.bf16.mxu0 0
  %1024 = vmatpush1.bf16.msra.mxu0 %v934
  %1025 = vmatprep.subr.bf16.mxu0 0
  %1026 = vmatpush1.bf16.msra.mxu0 %v935
  %1027 = vmatprep.subr.bf16.mxu0 0
  %1028 = vmatpush1.bf16.msra.mxu0 %v936
  %1029 = vmatprep.subr.bf16.mxu0 0
  %1030 = vmatpush1.bf16.msra.mxu0 %v937
  %1031 = vmatprep.subr.bf16.mxu0 0
  %1032 = vmatpush1.bf16.msra.mxu0 %v938
  %1033 = vmatprep.subr.bf16.mxu0 0
  %1034 = vmatpush1.bf16.msra.mxu0 %v939
  %1035 = vmatprep.subr.bf16.mxu0 0
  %1036 = vmatpush1.bf16.msra.mxu0 %v940
  %1037 = vmatprep.subr.bf16.mxu0 0
  %1038 = vmatpush1.bf16.msra.mxu0 %v941
  %1039 = vmatprep.subr.bf16.mxu0 0
  %1040 = vmatpush1.bf16.msra.mxu0 %v942
  %1041 = vmatprep.subr.bf16.mxu0 0
  %1042 = vmatpush1.bf16.msra.mxu0 %v943
  %1043 = vmatprep.subr.bf16.mxu0 0
  %1044 = vmatpush1.bf16.msra.mxu0 %v944
  %1045 = vmatprep.subr.bf16.mxu0 0
  %1046 = vmatpush1.bf16.msra.mxu0 %v945
  %1047 = vmatprep.subr.bf16.mxu0 0
  %1048 = vmatpush1.bf16.msra.mxu0 %v946
  %1049 = vmatprep.subr.bf16.mxu0 0
  %1050 = vmatpush1.bf16.msra.mxu0 %v947
  %1051 = vmatprep.subr.bf16.mxu0 0
  %1052 = vmatpush1.bf16.msra.mxu0 %v948
  %1053 = vmatprep.mubr.bf16.mxu0 %v717
  %1054 = vmatmul.mubr.bf16.gmra.mrb[0].mxu0 %v716
  %v1055 = vpop.f32.mrb[0].mxu0
  %v1056 = vadd.f32 %v1016, %v1055
  %v1057 = vpop.f32.mrb[0].mxu0
  %v1058 = vpop.f32.mrb[0].mxu0
  %v1059 = vpop.f32.mrb[0].mxu0
  %1060 = vdwg.mxu0
  %1061 = vst [vmem:[%s6] sm:$0xff] %v1056
  // Predicated region
  $region26: #{cnn_classifier_forward.1} parent=0 // pred_check
    _
  $region27: #{cnn_classifier_forward.1} parent=0 // pred_check_branch
    %1063 = sbr.rel (0) target = $region29
  $region28: #{cnn_classifier_forward.1} parent=0 // pred_region
    _
  $region29: #{cnn_classifier_forward.1} parent=0 // pred_fallthru
    _
  // Predicated region
  $region30: #{cnn_classifier_forward.1} parent=0 // pred_check
    _
  $region31: #{cnn_classifier_forward.1} parent=0 // pred_check_branch
    %1065 = sbr.rel (0) target = $region33
  $region32: #{cnn_classifier_forward.1} parent=0 // pred_region
    _
  $region33: #{cnn_classifier_forward.1} parent=0 // pred_fallthru
    _

</llo_original>
